<compile_context>
chip_gen: v6e
topology: v6e:2x2x1
jax: 0.10.0
libtpu: 0.0.40
codegen_flags: <defaults>
</compile_context>

<pallas_src>
import math

import jax
import jax.numpy as jnp
from jax.experimental import pallas as pl
from jax.experimental.pallas import tpu as pltpu


def _round_up(a, b):
    return (a + b - 1) // b * b


# ----------------------------------------------------------------------------
# Kernel bodies
# ----------------------------------------------------------------------------
def gcn_rowstrip_kernel(counts_ref, x_ref, dinv_src_ref, dinv_dst_ref,
                        w_ref, b_ref, o_ref):
    """1-D grid over dst-row strips: whole reduction in one step, no scratch."""
    # src-side deg^-1/2 scaling folded in (VPU work, hides under DMA/MXU).
    # NOTE: bf16 MXU operands (f32 accumulation) -> ~3 decimal digits of input
    # precision; acceptable for GCN forward, reflected in the test tolerance.
    xs = (x_ref[...] * dinv_src_ref[...]).astype(jnp.bfloat16)
    counts = counts_ref[...].astype(jnp.float32).astype(jnp.bfloat16)  # int8 unpack
    # Dominant N^2 matmul on the small channel count, bf16 in / f32 acc.
    agg = jnp.dot(counts, xs, preferred_element_type=jnp.float32)
    agg = agg * dinv_dst_ref[...]                      # dst-side deg^-1/2
    h = jnp.dot(agg, w_ref[...], preferred_element_type=jnp.float32)
    o_ref[...] = jnp.maximum(h + b_ref[...], 0.0).astype(o_ref.dtype)


def gcn_reduce_kernel(counts_ref, x_ref, dinv_src_ref, dinv_dst_ref,
                      w_ref, b_ref, o_ref, acc_ref):
    """2-D grid (dst-row tiles x src-reduction tiles) with an f32 accumulator."""
    k = pl.program_id(1)

    @pl.when(k == 0)
    def _():
        acc_ref[...] = jnp.zeros_like(acc_ref)

    xs = (x_ref[...] * dinv_src_ref[...]).astype(jnp.bfloat16)
    counts = counts_ref[...].astype(jnp.float32).astype(jnp.bfloat16)  # int8 unpack
    acc_ref[...] += jnp.dot(counts, xs, preferred_element_type=jnp.float32)

    @pl.when(k == pl.num_programs(1) - 1)
    def _():
        # dst-side deg^-1/2, then feature transform once per dst-row block.
        agg = acc_ref[...] * dinv_dst_ref[...]
        h = jnp.dot(agg, w_ref[...], preferred_element_type=jnp.float32)
        o_ref[...] = jnp.maximum(h + b_ref[...], 0.0).astype(o_ref.dtype)


# ----------------------------------------------------------------------------
# Wrapper
# ----------------------------------------------------------------------------
def gcn_layer(x, edge_index, weight, bias, *, tm=None, tk=None):
    """x: (N, in_c) f32, edge_index: (2, E) int32, weight: (in_c, out_c), bias: (out_c,)."""
    n, in_c = x.shape
    out_c = weight.shape[1]

    # ---- tile / padding selection -----------------------------------------
    n128 = _round_up(max(n, 1), 128)          # minimal lane-aligned node count
    if tm is None:
        tm = min(512, n128)                   # big row tile: amortize per-step overhead
        if n128 // tm < 2 and n128 >= 256:
            tm = n128 // 2                     # keep >= 2 row blocks (v7x megacore)
    if tk is None:
        n_tmp = _round_up(n128, tm)
        # Full-strip reduction (drop the k grid axis, no accumulator) when the
        # double-buffered int8 strip is cheap; else a big-but-capped reduction
        # tile (respects v7x's 64 MiB physical VMEM with large headroom).
        tk = n_tmp if 2 * tm * n_tmp <= 8 * 1024 * 1024 else min(2048, n_tmp)
    n_pad = _round_up(n128, math.lcm(tm, tk))
    full_strip = (tk == n_pad)

    out_pad = _round_up(out_c, 128)           # lane-dense output stores

    src, dst = edge_index[0], edge_index[1]

    # ---- O(E)/O(N) index bookkeeping (XLA glue) ----------------------------
    deg = jnp.zeros((n_pad,), jnp.float32).at[src].add(1.0)
    dinv = jnp.where(deg > 0.0, jax.lax.rsqrt(jnp.maximum(deg, 1.0)), 0.0)
    dinv = dinv.reshape(n_pad, 1)

    # Multi-edge counts as int8 in HBM (the dominant traffic); exact scatter
    # in int32, saturated at 127 before the narrow cast.
    counts = jnp.zeros((n_pad, n_pad), jnp.int32).at[dst, src].add(1)
    counts = jnp.clip(counts, 0, 127).astype(jnp.int8)
    # TODO(synk): multiplicities > 127 for one (dst, src) pair need int16/bf16
    # storage; and for genuinely sparse graphs (E << N^2) a CSR/scalar-prefetch
    # gather kernel (plus reusing a static adjacency across layers) beats this
    # dense O(N^2) build + read outright.

    x_pad = jnp.pad(x, ((0, n_pad - n), (0, 0)))
    w_pad = jnp.pad(weight, ((0, 0), (0, out_pad - out_c)))
    b_pad = jnp.pad(bias, (0, out_pad - out_c)).reshape(1, out_pad)

    cost = pl.CostEstimate(
        flops=2 * n_pad * n_pad * in_c + 2 * n_pad * in_c * out_pad,
        transcendentals=0,
        bytes_accessed=(counts.size * 1 + x_pad.size * 4 + 2 * n_pad * 4
                        + w_pad.size * 4 + b_pad.size * 4
                        + n_pad * out_pad * 4),
    )
    compiler_params = pltpu.CompilerParams(
        dimension_semantics=(("parallel",) if full_strip
                             else ("parallel", "arbitrary")),
        vmem_limit_bytes=32 * 1024 * 1024,
    )
    out_shape = jax.ShapeDtypeStruct((n_pad, out_pad), x.dtype)

    if full_strip:
        # 1-D grid over dst-row strips; whole reduction per step.
        grid = (n_pad // tm,)
        out = pl.pallas_call(
            gcn_rowstrip_kernel,
            out_shape=out_shape,
            grid_spec=pltpu.PrefetchScalarGridSpec(
                num_scalar_prefetch=0,
                grid=grid,
                in_specs=[
                    pl.BlockSpec((tm, n_pad), lambda i: (i, 0)),       # counts row strip (int8)
                    pl.BlockSpec((n_pad, in_c), lambda i: (0, 0)),     # x (all src rows)
                    pl.BlockSpec((n_pad, 1), lambda i: (0, 0)),        # dinv (src)
                    pl.BlockSpec((tm, 1), lambda i: (i, 0)),           # dinv (dst)
                    pl.BlockSpec((in_c, out_pad), lambda i: (0, 0)),   # W (lane-padded)
                    pl.BlockSpec((1, out_pad), lambda i: (0, 0)),      # bias (lane-padded)
                ],
                out_specs=pl.BlockSpec((tm, out_pad), lambda i: (i, 0)),
            ),
            compiler_params=compiler_params,
            cost_estimate=cost,
        )(counts, x_pad, dinv, dinv, w_pad, b_pad)
    else:
        # 2-D grid: reduction axis last ('arbitrary'), rows 'parallel'.
        grid = (n_pad // tm, n_pad // tk)
        out = pl.pallas_call(
            gcn_reduce_kernel,
            out_shape=out_shape,
            grid_spec=pltpu.PrefetchScalarGridSpec(
                num_scalar_prefetch=0,
                grid=grid,
                in_specs=[
                    pl.BlockSpec((tm, tk), lambda i, k: (i, k)),         # counts tile (int8)
                    pl.BlockSpec((tk, in_c), lambda i, k: (k, 0)),       # x (src block)
                    pl.BlockSpec((tk, 1), lambda i, k: (k, 0)),          # dinv (src)
                    pl.BlockSpec((tm, 1), lambda i, k: (i, 0)),          # dinv (dst)
                    pl.BlockSpec((in_c, out_pad), lambda i, k: (0, 0)),  # W (lane-padded)
                    pl.BlockSpec((1, out_pad), lambda i, k: (0, 0)),     # bias (lane-padded)
                ],
                out_specs=pl.BlockSpec((tm, out_pad), lambda i, k: (i, 0)),
                scratch_shapes=[pltpu.VMEM((tm, in_c), jnp.float32)],    # f32 accumulator
            ),
            compiler_params=compiler_params,
            cost_estimate=cost,
        )(counts, x_pad, dinv, dinv, w_pad, b_pad)

    return out[:n, :out_c]


# ----------------------------------------------------------------------------
# Plain-JAX reference (NodeModelAdditive + ReLU, edge-by-edge form)
# ----------------------------------------------------------------------------
def gcn_layer_ref(x, edge_index, weight, bias):
    src, dst = edge_index[0], edge_index[1]
    h = x @ weight
    deg = jnp.zeros((x.shape[0],), jnp.float32).at[src].add(1.0)
    dinv = jnp.where(deg > 0.0, deg ** -0.5, 0.0)
    norm = dinv[src] * dinv[dst]
    x_j = h[src] * norm[:, None]
    out = jnp.zeros_like(h).at[dst].add(x_j)
    return jnp.maximum(out + bias[None, :], 0.0)


if __name__ == "__main__":
    # Small but multi-tile: N=200 pads to 256. Default tiles take the 1-D
    # full-strip path (grid (2,)); forced 128x128 tiles exercise the 2-D
    # reduction-grid / accumulator path (grid (2, 2)).
    N, IN_C, OUT_C, E = 200, 8, 32, 1600

    key = jax.random.PRNGKey(0)
    k_x, k_w, k_b, k_e = jax.random.split(key, 4)

    x = jax.random.normal(k_x, (N, IN_C), dtype=jnp.float32)
    limit = (6.0 / (IN_C + OUT_C)) ** 0.5
    weight = jax.random.uniform(k_w, (IN_C, OUT_C), jnp.float32, -limit, limit)
    bias = 0.1 * jax.random.normal(k_b, (OUT_C,), dtype=jnp.float32)
    edge_index = jax.random.randint(k_e, (2, E), 0, N, dtype=jnp.int32)

    ref = gcn_layer_ref(x, edge_index, weight, bias)

    # Path 1: auto tile selection -> single-pass row-strip kernel (1-D grid).
    out = jax.block_until_ready(gcn_layer(x, edge_index, weight, bias))
    assert out.shape == (N, OUT_C)
    err1 = float(jnp.max(jnp.abs(out - ref)))
    # bf16 MXU operands (f32 accumulation) loosen the tolerance slightly.
    assert jnp.allclose(out, ref, atol=2e-2, rtol=2e-2), (
        f"row-strip path mismatch vs reference, max abs err={err1}")

    # Path 2: forced small tiles -> 2-D reduction grid with VMEM accumulator.
    out2 = jax.block_until_ready(
        gcn_layer(x, edge_index, weight, bias, tm=128, tk=128))
    assert out2.shape == (N, OUT_C)
    err2 = float(jnp.max(jnp.abs(out2 - ref)))
    assert jnp.allclose(out2, ref, atol=2e-2, rtol=2e-2), (
        f"reduction-grid path mismatch vs reference, max abs err={err2}")

    print("KERNEL_OK")
</pallas_src>

<mosaic_0001>
module attributes {stable_mosaic.version = 11 : i64} {
  func.func @gcn_rowstrip_kernel(%arg0: i32, %arg1: memref<128x256xi8, #tpu.memory_space<vmem>>, %arg2: memref<256x8xf32, #tpu.memory_space<vmem>>, %arg3: memref<256x1xf32, #tpu.memory_space<vmem>>, %arg4: memref<128x1xf32, #tpu.memory_space<vmem>>, %arg5: memref<8x128xf32, #tpu.memory_space<vmem>>, %arg6: memref<1x128xf32, #tpu.memory_space<vmem>>, %arg7: memref<128x128xf32, #tpu.memory_space<vmem>>) attributes {dimension_semantics = [#tpu.dimension_semantics<parallel>], iteration_bounds = array<i64: 2>, scalar_prefetch = 0 : i64, scratch_operands = 0 : i64, tpu.core_type = #tpu.core_type<tc>, window_params = [{transform_indices = @transform_0, window_bounds = array<i64: 128, 256>}, {pipeline_mode = #tpu.pipeline_mode<synchronous>, transform_indices = @transform_1, window_bounds = array<i64: 256, 8>}, {pipeline_mode = #tpu.pipeline_mode<synchronous>, transform_indices = @transform_2, window_bounds = array<i64: 256, 1>}, {transform_indices = @transform_3, window_bounds = array<i64: 128, 1>}, {pipeline_mode = #tpu.pipeline_mode<synchronous>, transform_indices = @transform_4, window_bounds = array<i64: 8, 128>}, {pipeline_mode = #tpu.pipeline_mode<synchronous>, transform_indices = @transform_5, window_bounds = array<i64: 1, 128>}, {transform_indices = @transform_6, window_bounds = array<i64: 128, 128>}]} {
    %c0 = arith.constant 0 : index
    %c0_0 = arith.constant 0 : index
    %0 = vector.load %arg2[%c0, %c0_0] : memref<256x8xf32, #tpu.memory_space<vmem>>, vector<256x8xf32>
    %c0_1 = arith.constant 0 : index
    %c0_2 = arith.constant 0 : index
    %1 = vector.load %arg3[%c0_1, %c0_2] : memref<256x1xf32, #tpu.memory_space<vmem>>, vector<256x1xf32>
    %2 = vector.broadcast %1 : vector<256x1xf32> to vector<256x8xf32>
    %3 = arith.mulf %0, %2 : vector<256x8xf32>
    %4 = arith.truncf %3 : vector<256x8xf32> to vector<256x8xbf16>
    %c0_3 = arith.constant 0 : index
    %c0_4 = arith.constant 0 : index
    %5 = vector.load %arg1[%c0_3, %c0_4] : memref<128x256xi8, #tpu.memory_space<vmem>>, vector<128x256xi8>
    %6 = arith.sitofp %5 : vector<128x256xi8> to vector<128x256xf32>
    %7 = arith.truncf %6 : vector<128x256xf32> to vector<128x256xbf16>
    %cst = arith.constant dense<0.000000e+00> : vector<128x8xf32>
    %8 = tpu.matmul %7, %4, %cst {dimension_numbers = #tpu.dot_dimension_numbers<[1], [0], [0], [1], [0, 0, 1, 1], [], []>} : vector<128x256xbf16>, vector<256x8xbf16>, vector<128x8xf32> -> vector<128x8xf32>
    %c0_5 = arith.constant 0 : index
    %c0_6 = arith.constant 0 : index
    %9 = vector.load %arg4[%c0_5, %c0_6] : memref<128x1xf32, #tpu.memory_space<vmem>>, vector<128x1xf32>
    %10 = vector.broadcast %9 : vector<128x1xf32> to vector<128x8xf32>
    %11 = arith.mulf %8, %10 : vector<128x8xf32>
    %c0_7 = arith.constant 0 : index
    %c0_8 = arith.constant 0 : index
    %12 = vector.load %arg5[%c0_7, %c0_8] : memref<8x128xf32, #tpu.memory_space<vmem>>, vector<8x128xf32>
    %cst_9 = arith.constant dense<0.000000e+00> : vector<128x128xf32>
    %13 = tpu.matmul %11, %12, %cst_9 {dimension_numbers = #tpu.dot_dimension_numbers<[1], [0], [0], [1], [0, 0, 1, 1], [], []>} : vector<128x8xf32>, vector<8x128xf32>, vector<128x128xf32> -> vector<128x128xf32>
    %c0_10 = arith.constant 0 : index
    %c0_11 = arith.constant 0 : index
    %14 = vector.load %arg6[%c0_10, %c0_11] : memref<1x128xf32, #tpu.memory_space<vmem>>, vector<1x128xf32>
    %15 = vector.broadcast %14 : vector<1x128xf32> to vector<128x128xf32>
    %16 = arith.addf %13, %15 : vector<128x128xf32>
    %cst_12 = arith.constant 0.000000e+00 : f32
    %17 = vector.broadcast %cst_12 : f32 to vector<128x128xf32>
    %18 = arith.maximumf %16, %17 : vector<128x128xf32>
    %c0_13 = arith.constant 0 : index
    %c0_14 = arith.constant 0 : index
    %19 = vector.load %arg7[%c0_13, %c0_14] : memref<128x128xf32, #tpu.memory_space<vmem>>, vector<128x128xf32>
    tpu.vector_store %arg7[%c0_13, %c0_14], %18 {strides = array<i32>} : memref<128x128xf32, #tpu.memory_space<vmem>>, vector<128x128xf32>,
    return
  }
  func.func @transform_0(%arg0: i32) -> (i32, i32) {
    %c0_i32 = arith.constant 0 : i32
    %c0_i32_0 = arith.constant 0 : i32
    return %arg0, %c0_i32 : i32, i32
  }
  func.func @transform_1(%arg0: i32) -> (i32, i32) {
    %c0_i32 = arith.constant 0 : i32
    %c0_i32_0 = arith.constant 0 : i32
    %c0_i32_1 = arith.constant 0 : i32
    return %c0_i32, %c0_i32_0 : i32, i32
  }
  func.func @transform_2(%arg0: i32) -> (i32, i32) {
    %c0_i32 = arith.constant 0 : i32
    %c0_i32_0 = arith.constant 0 : i32
    %c0_i32_1 = arith.constant 0 : i32
    return %c0_i32, %c0_i32_0 : i32, i32
  }
  func.func @transform_3(%arg0: i32) -> (i32, i32) {
    %c0_i32 = arith.constant 0 : i32
    %c0_i32_0 = arith.constant 0 : i32
    return %arg0, %c0_i32 : i32, i32
  }
  func.func @transform_4(%arg0: i32) -> (i32, i32) {
    %c0_i32 = arith.constant 0 : i32
    %c0_i32_0 = arith.constant 0 : i32
    %c0_i32_1 = arith.constant 0 : i32
    return %c0_i32, %c0_i32_0 : i32, i32
  }
  func.func @transform_5(%arg0: i32) -> (i32, i32) {
    %c0_i32 = arith.constant 0 : i32
    %c0_i32_0 = arith.constant 0 : i32
    %c0_i32_1 = arith.constant 0 : i32
    return %c0_i32, %c0_i32_0 : i32, i32
  }
  func.func @transform_6(%arg0: i32) -> (i32, i32) {
    %c0_i32 = arith.constant 0 : i32
    %c0_i32_0 = arith.constant 0 : i32
    return %arg0, %c0_i32 : i32, i32
  }
}

</mosaic_0001>

<llo_original>
// kernel: tpu_custom_call.1
$region0: #{tpu_custom_call.1}
  #allocation0 [shape = 'u32[]', space=smem, size = 0x4, offset = 0x4, fixed_abs, tag = 'smem constant byte address 0x4 - core index']
  #allocation1 [shape = 'u32[144,128]{1,0:T(1,128)}', space=vmem, size = 0x12000, scoped, tag = 'internal scratch']
  %s0 = inlined_call_operand.vmem [shape: s8[256,256], index: 0, kind: input, shape index: {}]
  %s1 = inlined_call_operand.vmem [shape: f32[256,8], index: 1, kind: input, shape index: {}]
  %s2 = inlined_call_operand.vmem [shape: f32[256,1], index: 2, kind: input, shape index: {}]
  %s3 = inlined_call_operand.vmem [shape: f32[256,1], index: 3, kind: input, shape index: {}]
  %s4 = inlined_call_operand.vmem [shape: f32[8,128], index: 4, kind: input, shape index: {}]
  %s5 = inlined_call_operand.vmem [shape: f32[1,128], index: 5, kind: input, shape index: {}]
  %s6 = inlined_call_operand.hbm [shape: f32[256,128], index: 6, kind: output, shape index: {}]
  %s7 = sld [smem:[#allocation0]]
  $region57: #{tpu_custom_call.1} parent=0
    _
  %s9 = ssub.s32 1, %s7
  %s10 = scalar_select 0, %s9, %s7
  $region1: #{tpu_custom_call.1} parent=0
    #allocation2 [shape = 'u8[131072]{0}', space=vmem, size = 0x20000, scoped, tag = 'output window, operand 0']
    #allocation3 [shape = 's32[2]{0}', space=sflag, size = 0x8, scoped, tag = 'scoped memory for tpu_custom_call.1']
    %11 = vsyncpa [#allocation3], 0
    %s12 = scalar_lea.sflag [#allocation3], 1
    %13 = vsyncpa %s12, 0
    loop: start=0, step=1, limit=4
    $region2: #{tpu_custom_call.1} parent=1 // loop_pre_header
      _
    $region3: #{tpu_custom_call.1} parent=1 // loop_header
      %s15 = sphi 0, %s19
      %p16 = scmp.ge.s32.totalorder %s15, 4
      %s25 = sphi 0, %s27
      %s28 = sphi 0, %s25
      %s29 = sphi 0, %s28
      %s45 = sphi 0, %s29
      %s49 = sphi 0, %s49
      %s51 = sphi 0, %s49
      %s52 = sphi 0, %s51
      %s66 = sphi 0, %s52
      %s70 = sphi 0, %s70
      %s72 = sphi 0, %s70
      %s73 = sphi 0, %s72
      %s87 = sphi 0, %s73
      %s93 = sphi 0, %s95
      %s96 = sphi 0, %s93
      %s97 = sphi 0, %s96
      %s113 = sphi 0, %s97
      %s117 = sphi 0, %s117
      %s119 = sphi 0, %s117
      %s120 = sphi 0, %s119
      %s134 = sphi 0, %s120
      %s138 = sphi 0, %s138
      %s140 = sphi 0, %s138
      %s141 = sphi 0, %s140
      %s155 = sphi 0, %s141
      %s161 = sphi 0, %s163
      %s164 = sphi 0, %s161
      %s165 = sphi 0, %s164
      %s181 = sphi 0, %s165
    $region4: #{tpu_custom_call.1} parent=1 // loop_header_branch
      %18 = sbr.rel (%p16) target = $region8
    $region5: #{tpu_custom_call.1} parent=1 // loop_body
      %s20 = ssub.s32 %s15, 1
      %s21 = ssub.s32 %s15, 2
      %s22 = sadd.s32 %s15, 1
      %s23 = ssub.s32 %s15, %s22
      %p24 = scmp.eq.s32.totalorder %s23, 0
      %s26 = sadd.s32 %s25, 1
      %s27 = scalar_select %p24, %s25, %s26
      %p30 = pneg %p24
      %p31 = scmp.eq.s32.totalorder %s15, 1
      %p32 = por %p30, %p31
      %p33 = scmp.ne.s32.totalorder %s25, %s28
      %p34 = scmp.eq.s32.totalorder %s15, 0
      %p35 = por %p33, %p34
      %p36 = scmp.ne.s32.totalorder %s25, %s28
      %p37 = scmp.eq.s32.totalorder %s20, 1
      %p38 = por %p36, %p37
      %p39 = scmp.ne.s32.totalorder %s28, %s29
      %p40 = scmp.eq.s32.totalorder %s20, 0
      %p41 = por %p39, %p40
      %p42 = scmp.ne.s32.totalorder %s28, %s29
      %p43 = scmp.eq.s32.totalorder %s21, 1
      %p44 = por %p42, %p43
      %p46 = scmp.ne.s32.totalorder %s29, %s45
      %p47 = scmp.eq.s32.totalorder %s21, 0
      %p48 = por %p46, %p47
      %s50 = sadd.s32 %s49, 1
      %p53 = scmp.eq.s32.totalorder %s15, 1
      %p54 = scmp.ne.s32.totalorder %s49, %s51
      %p55 = scmp.eq.s32.totalorder %s15, 0
      %p56 = por %p54, %p55
      %p57 = scmp.ne.s32.totalorder %s49, %s51
      %p58 = scmp.eq.s32.totalorder %s20, 1
      %p59 = por %p57, %p58
      %p60 = scmp.ne.s32.totalorder %s51, %s52
      %p61 = scmp.eq.s32.totalorder %s20, 0
      %p62 = por %p60, %p61
      %p63 = scmp.ne.s32.totalorder %s51, %s52
      %p64 = scmp.eq.s32.totalorder %s21, 1
      %p65 = por %p63, %p64
      %p67 = scmp.ne.s32.totalorder %s52, %s66
      %p68 = scmp.eq.s32.totalorder %s21, 0
      %p69 = por %p67, %p68
      %s71 = sadd.s32 %s70, 1
      %p74 = scmp.eq.s32.totalorder %s15, 1
      %p75 = scmp.ne.s32.totalorder %s70, %s72
      %p76 = scmp.eq.s32.totalorder %s15, 0
      %p77 = por %p75, %p76
      %p78 = scmp.ne.s32.totalorder %s70, %s72
      %p79 = scmp.eq.s32.totalorder %s20, 1
      %p80 = por %p78, %p79
      %p81 = scmp.ne.s32.totalorder %s72, %s73
      %p82 = scmp.eq.s32.totalorder %s20, 0
      %p83 = por %p81, %p82
      %p84 = scmp.ne.s32.totalorder %s72, %s73
      %p85 = scmp.eq.s32.totalorder %s21, 1
      %p86 = por %p84, %p85
      %p88 = scmp.ne.s32.totalorder %s73, %s87
      %p89 = scmp.eq.s32.totalorder %s21, 0
      %p90 = por %p88, %p89
      %s91 = ssub.s32 %s15, %s22
      %p92 = scmp.eq.s32.totalorder %s91, 0
      %s94 = sadd.s32 %s93, 1
      %s95 = scalar_select %p92, %s93, %s94
      %p98 = pneg %p92
      %p99 = scmp.eq.s32.totalorder %s15, 1
      %p100 = por %p98, %p99
      %p101 = scmp.ne.s32.totalorder %s93, %s96
      %p102 = scmp.eq.s32.totalorder %s15, 0
      %p103 = por %p101, %p102
      %p104 = scmp.ne.s32.totalorder %s93, %s96
      %p105 = scmp.eq.s32.totalorder %s20, 1
      %p106 = por %p104, %p105
      %p107 = scmp.ne.s32.totalorder %s96, %s97
      %p108 = scmp.eq.s32.totalorder %s20, 0
      %p109 = por %p107, %p108
      %p110 = scmp.ne.s32.totalorder %s96, %s97
      %p111 = scmp.eq.s32.totalorder %s21, 1
      %p112 = por %p110, %p111
      %p114 = scmp.ne.s32.totalorder %s97, %s113
      %p115 = scmp.eq.s32.totalorder %s21, 0
      %p116 = por %p114, %p115
      %s118 = sadd.s32 %s117, 1
      %p121 = scmp.eq.s32.totalorder %s15, 1
      %p122 = scmp.ne.s32.totalorder %s117, %s119
      %p123 = scmp.eq.s32.totalorder %s15, 0
      %p124 = por %p122, %p123
      %p125 = scmp.ne.s32.totalorder %s117, %s119
      %p126 = scmp.eq.s32.totalorder %s20, 1
      %p127 = por %p125, %p126
      %p128 = scmp.ne.s32.totalorder %s119, %s120
      %p129 = scmp.eq.s32.totalorder %s20, 0
      %p130 = por %p128, %p129
      %p131 = scmp.ne.s32.totalorder %s119, %s120
      %p132 = scmp.eq.s32.totalorder %s21, 1
      %p133 = por %p131, %p132
      %p135 = scmp.ne.s32.totalorder %s120, %s134
      %p136 = scmp.eq.s32.totalorder %s21, 0
      %p137 = por %p135, %p136
      %s139 = sadd.s32 %s138, 1
      %p142 = scmp.eq.s32.totalorder %s15, 1
      %p143 = scmp.ne.s32.totalorder %s138, %s140
      %p144 = scmp.eq.s32.totalorder %s15, 0
      %p145 = por %p143, %p144
      %p146 = scmp.ne.s32.totalorder %s138, %s140
      %p147 = scmp.eq.s32.totalorder %s20, 1
      %p148 = por %p146, %p147
      %p149 = scmp.ne.s32.totalorder %s140, %s141
      %p150 = scmp.eq.s32.totalorder %s20, 0
      %p151 = por %p149, %p150
      %p152 = scmp.ne.s32.totalorder %s140, %s141
      %p153 = scmp.eq.s32.totalorder %s21, 1
      %p154 = por %p152, %p153
      %p156 = scmp.ne.s32.totalorder %s141, %s155
      %p157 = scmp.eq.s32.totalorder %s21, 0
      %p158 = por %p156, %p157
      %s159 = ssub.s32 %s15, %s22
      %p160 = scmp.eq.s32.totalorder %s159, 0
      %s162 = sadd.s32 %s161, 1
      %s163 = scalar_select %p160, %s161, %s162
      %p166 = pneg %p160
      %p167 = scmp.eq.s32.totalorder %s15, 1
      %p168 = por %p166, %p167
      %p169 = scmp.ne.s32.totalorder %s161, %s164
      %p170 = scmp.eq.s32.totalorder %s15, 0
      %p171 = por %p169, %p170
      %p172 = scmp.ne.s32.totalorder %s161, %s164
      %p173 = scmp.eq.s32.totalorder %s20, 1
      %p174 = por %p172, %p173
      %p175 = scmp.ne.s32.totalorder %s164, %s165
      %p176 = scmp.eq.s32.totalorder %s20, 0
      %p177 = por %p175, %p176
      %p178 = scmp.ne.s32.totalorder %s164, %s165
      %p179 = scmp.eq.s32.totalorder %s21, 1
      %p180 = por %p178, %p179
      %p182 = scmp.ne.s32.totalorder %s165, %s181
      %p183 = scmp.eq.s32.totalorder %s21, 0
      %p184 = por %p182, %p183
      %p185 = scmp.le.s32.totalorder 1, %s15
      %p186 = scmp.lt.s32.totalorder %s15, 3
      %p187 = pnand %p185, %p186
      %p188 = pneg %p187
      // Predicated region
      $region9: #{tpu_custom_call.1} parent=5 // pred_check
        _
      $region10: #{tpu_custom_call.1} parent=5 // pred_check_branch
        %190 = sbr.rel (%p187) target = $region12
      $region11: #{tpu_custom_call.1} parent=5 // pred_region
        %s191 = ssub.s32 %s15, 1
        // Predicated region
        $region13: #{tpu_custom_call.1} parent=11 // pred_check
          %p192 = pneg %p62
        $region14: #{tpu_custom_call.1} parent=11 // pred_check_branch
          %194 = sbr.rel (%p192) target = $region16
        $region15: #{tpu_custom_call.1} parent=11 // pred_region
          _
        $region16: #{tpu_custom_call.1} parent=11 // pred_fallthru
          _
        // Predicated region
        $region17: #{tpu_custom_call.1} parent=11 // pred_check
          %p195 = pneg %p83
        $region18: #{tpu_custom_call.1} parent=11 // pred_check_branch
          %197 = sbr.rel (%p195) target = $region20
        $region19: #{tpu_custom_call.1} parent=11 // pred_region
          _
        $region20: #{tpu_custom_call.1} parent=11 // pred_fallthru
          _
        // Predicated region
        $region21: #{tpu_custom_call.1} parent=11 // pred_check
          %p198 = pneg %p130
        $region22: #{tpu_custom_call.1} parent=11 // pred_check_branch
          %200 = sbr.rel (%p198) target = $region24
        $region23: #{tpu_custom_call.1} parent=11 // pred_region
          _
        $region24: #{tpu_custom_call.1} parent=11 // pred_fallthru
          _
        // Predicated region
        $region25: #{tpu_custom_call.1} parent=11 // pred_check
          %p201 = pneg %p151
        $region26: #{tpu_custom_call.1} parent=11 // pred_check_branch
          %203 = sbr.rel (%p201) target = $region28
        $region27: #{tpu_custom_call.1} parent=11 // pred_region
          _
        $region28: #{tpu_custom_call.1} parent=11 // pred_fallthru
          _
      $region12: #{tpu_custom_call.1} parent=5 // pred_fallthru
        _
      %p204 = scmp.lt.s32.totalorder %s15, 2
      // Predicated region
      $region29: #{tpu_custom_call.1} parent=5 // pred_check
        %p205 = pneg %p204
      $region30: #{tpu_custom_call.1} parent=5 // pred_check_branch
        %207 = sbr.rel (%p205) target = $region32
      $region31: #{tpu_custom_call.1} parent=5 // pred_region
        // Predicated region
        $region33: #{tpu_custom_call.1} parent=31 // pred_check
          %p208 = pneg %p35
        $region34: #{tpu_custom_call.1} parent=31 // pred_check_branch
          %210 = sbr.rel (%p208) target = $region36
        $region35: #{tpu_custom_call.1} parent=31 // pred_region
          %s211 = smul.u32 4, %s15
          %p212 = scmp.lt.s32.totalorder %s211, 7
          %s213 = scalar_select %p212, %s211, 7
          %s214 = smul.addr %s213, 2
          %s215 = smul.addr %s214, 8
          %s216 = scalar_lea.vmem %s0, %s215
          %s217 = smul.u32 4, %s15
        $region36: #{tpu_custom_call.1} parent=31 // pred_fallthru
          _
        // Predicated region
        $region37: #{tpu_custom_call.1} parent=31 // pred_check
          %p218 = pneg %p103
        $region38: #{tpu_custom_call.1} parent=31 // pred_check_branch
          %220 = sbr.rel (%p218) target = $region40
        $region39: #{tpu_custom_call.1} parent=31 // pred_region
          %s221 = smul.u32 16, %s15
          %p222 = scmp.lt.s32.totalorder %s221, 31
          %s223 = scalar_select %p222, %s221, 31
          %s224 = smul.addr %s223, 8
          %s225 = scalar_lea.vmem %s3, %s224
          %s226 = smul.u32 16, %s15
        $region40: #{tpu_custom_call.1} parent=31 // pred_fallthru
          _
      $region32: #{tpu_custom_call.1} parent=5 // pred_fallthru
        _
      %p227 = scmp.le.s32.totalorder 1, %s15
      %p228 = scmp.lt.s32.totalorder %s15, 3
      %p229 = pnand %p227, %p228
      %p230 = pneg %p229
      // Predicated region
      $region41: #{tpu_custom_call.1} parent=5 // pred_check
        _
      $region42: #{tpu_custom_call.1} parent=5 // pred_check_branch
        %232 = sbr.rel (%p229) target = $region44
      $region43: #{tpu_custom_call.1} parent=5 // pred_region
        %s233 = ssub.s32 %s15, 1
        %s234 = smul.u32 4, %s20
        %p235 = scmp.lt.s32.totalorder %s234, 7
        %s236 = scalar_select %p235, %s234, 7
        %s237 = smul.addr %s236, 2
        %s238 = smul.addr %s237, 8
        %s239 = scalar_lea.vmem %s0, %s238
        %p240 = pneg %p41
        %p241 = pneg %p38
        %p242 = pneg %p62
        %p243 = pneg %p59
        %p244 = pneg %p83
        %p245 = pneg %p80
        %s246 = smul.u32 16, %s20
        %p247 = scmp.lt.s32.totalorder %s246, 31
        %s248 = scalar_select %p247, %s246, 31
        %s249 = smul.addr %s248, 8
        %s250 = scalar_lea.vmem %s3, %s249
        %p251 = pneg %p109
        %p252 = pneg %p106
        %p253 = pneg %p130
        %p254 = pneg %p127
        %p255 = pneg %p151
        %p256 = pneg %p148
        %p257 = pneg %p177
        %p258 = pneg %p174
        %s259 = sand.u32 %s164, 1
        %s260 = scalar_lea.sflag [#allocation3], %s259
        %s261 = sand.u32 %s164, 1
        %s262 = smul.addr %s261, 128
        %s263 = scalar_lea.vmem [#allocation2], %s262
        %s264 = smul.u32 4, %s20
        %p265 = scmp.lt.s32.totalorder %s264, 7
        %s266 = scalar_select %p265, %s264, 7
        %s267 = smul.addr %s266, 2
        %s268 = smul.addr %s267, 8
        %s269 = scalar_lea.vmem %s0, %s268
        %s270 = smul.u32 4, %s20
        %s271 = smul.u32 16, %s20
        %p272 = scmp.lt.s32.totalorder %s271, 31
        %s273 = scalar_select %p272, %s271, 31
        %s274 = smul.addr %s273, 8
        %s275 = scalar_lea.vmem %s3, %s274
        %s276 = smul.u32 16, %s20
        %s277 = smul.u32 16, %s20
        %v279 = vld [vmem:[%s1] sm:$0xff]
        %v280 = vld [vmem:[%s1 + $0x8] sm:$0xff]
        %v281 = vld [vmem:[%s1 + $0x10] sm:$0xff]
        %v282 = vld [vmem:[%s1 + $0x18] sm:$0xff]
        %v283 = vld [vmem:[%s1 + $0x20] sm:$0xff]
        %v284 = vld [vmem:[%s1 + $0x28] sm:$0xff]
        %v285 = vld [vmem:[%s1 + $0x30] sm:$0xff]
        %v286 = vld [vmem:[%s1 + $0x38] sm:$0xff]
        %v287 = vld [vmem:[%s1 + $0x40] sm:$0xff]
        %v288 = vld [vmem:[%s1 + $0x48] sm:$0xff]
        %v289 = vld [vmem:[%s1 + $0x50] sm:$0xff]
        %v290 = vld [vmem:[%s1 + $0x58] sm:$0xff]
        %v291 = vld [vmem:[%s1 + $0x60] sm:$0xff]
        %v292 = vld [vmem:[%s1 + $0x68] sm:$0xff]
        %v293 = vld [vmem:[%s1 + $0x70] sm:$0xff]
        %v294 = vld [vmem:[%s1 + $0x78] sm:$0xff]
        %v295 = vld [vmem:[%s1 + $0x80] sm:$0xff]
        %v296 = vld [vmem:[%s1 + $0x88] sm:$0xff]
        %v297 = vld [vmem:[%s1 + $0x90] sm:$0xff]
        %v298 = vld [vmem:[%s1 + $0x98] sm:$0xff]
        %v299 = vld [vmem:[%s1 + $0xa0] sm:$0xff]
        %v300 = vld [vmem:[%s1 + $0xa8] sm:$0xff]
        %v301 = vld [vmem:[%s1 + $0xb0] sm:$0xff]
        %v302 = vld [vmem:[%s1 + $0xb8] sm:$0xff]
        %v303 = vld [vmem:[%s1 + $0xc0] sm:$0xff]
        %v304 = vld [vmem:[%s1 + $0xc8] sm:$0xff]
        %v305 = vld [vmem:[%s1 + $0xd0] sm:$0xff]
        %v306 = vld [vmem:[%s1 + $0xd8] sm:$0xff]
        %v307 = vld [vmem:[%s1 + $0xe0] sm:$0xff]
        %v308 = vld [vmem:[%s1 + $0xe8] sm:$0xff]
        %v309 = vld [vmem:[%s1 + $0xf0] sm:$0xff]
        %v310 = vld [vmem:[%s1 + $0xf8] sm:$0xff]
        %v311 = vld [vmem:[%s2] sm:$0xff]
        %v312 = vld [vmem:[%s2 + $0x8] sm:$0xff]
        %v313 = vld [vmem:[%s2 + $0x10] sm:$0xff]
        %v314 = vld [vmem:[%s2 + $0x18] sm:$0xff]
        %v315 = vld [vmem:[%s2 + $0x20] sm:$0xff]
        %v316 = vld [vmem:[%s2 + $0x28] sm:$0xff]
        %v317 = vld [vmem:[%s2 + $0x30] sm:$0xff]
        %v318 = vld [vmem:[%s2 + $0x38] sm:$0xff]
        %v319 = vld [vmem:[%s2 + $0x40] sm:$0xff]
        %v320 = vld [vmem:[%s2 + $0x48] sm:$0xff]
        %v321 = vld [vmem:[%s2 + $0x50] sm:$0xff]
        %v322 = vld [vmem:[%s2 + $0x58] sm:$0xff]
        %v323 = vld [vmem:[%s2 + $0x60] sm:$0xff]
        %v324 = vld [vmem:[%s2 + $0x68] sm:$0xff]
        %v325 = vld [vmem:[%s2 + $0x70] sm:$0xff]
        %v326 = vld [vmem:[%s2 + $0x78] sm:$0xff]
        %v327 = vld [vmem:[%s2 + $0x80] sm:$0xff]
        %v328 = vld [vmem:[%s2 + $0x88] sm:$0xff]
        %v329 = vld [vmem:[%s2 + $0x90] sm:$0xff]
        %v330 = vld [vmem:[%s2 + $0x98] sm:$0xff]
        %v331 = vld [vmem:[%s2 + $0xa0] sm:$0xff]
        %v332 = vld [vmem:[%s2 + $0xa8] sm:$0xff]
        %v333 = vld [vmem:[%s2 + $0xb0] sm:$0xff]
        %v334 = vld [vmem:[%s2 + $0xb8] sm:$0xff]
        %v335 = vld [vmem:[%s2 + $0xc0] sm:$0xff]
        %v336 = vld [vmem:[%s2 + $0xc8] sm:$0xff]
        %v337 = vld [vmem:[%s2 + $0xd0] sm:$0xff]
        %v338 = vld [vmem:[%s2 + $0xd8] sm:$0xff]
        %v339 = vld [vmem:[%s2 + $0xe0] sm:$0xff]
        %v340 = vld [vmem:[%s2 + $0xe8] sm:$0xff]
        %v341 = vld [vmem:[%s2 + $0xf0] sm:$0xff]
        %v342 = vld [vmem:[%s2 + $0xf8] sm:$0xff]
        %344 = vset.pattern.permute.xlu0 0
        %345 = vperm.xlu0 %344, %v311
        %v346 = vpop.permute.xlu0 %345
        %349 = vset.pattern.permute.xlu0 0
        %350 = vperm.xlu0 %349, %v312
        %v351 = vpop.permute.xlu0 %350
        %354 = vset.pattern.permute.xlu0 0
        %355 = vperm.xlu0 %354, %v313
        %v356 = vpop.permute.xlu0 %355
        %359 = vset.pattern.permute.xlu0 0
        %360 = vperm.xlu0 %359, %v314
        %v361 = vpop.permute.xlu0 %360
        %364 = vset.pattern.permute.xlu0 0
        %365 = vperm.xlu0 %364, %v315
        %v366 = vpop.permute.xlu0 %365
        %369 = vset.pattern.permute.xlu0 0
        %370 = vperm.xlu0 %369, %v316
        %v371 = vpop.permute.xlu0 %370
        %374 = vset.pattern.permute.xlu0 0
        %375 = vperm.xlu0 %374, %v317
        %v376 = vpop.permute.xlu0 %375
        %379 = vset.pattern.permute.xlu0 0
        %380 = vperm.xlu0 %379, %v318
        %v381 = vpop.permute.xlu0 %380
        %384 = vset.pattern.permute.xlu0 0
        %385 = vperm.xlu0 %384, %v319
        %v386 = vpop.permute.xlu0 %385
        %389 = vset.pattern.permute.xlu0 0
        %390 = vperm.xlu0 %389, %v320
        %v391 = vpop.permute.xlu0 %390
        %394 = vset.pattern.permute.xlu0 0
        %395 = vperm.xlu0 %394, %v321
        %v396 = vpop.permute.xlu0 %395
        %399 = vset.pattern.permute.xlu0 0
        %400 = vperm.xlu0 %399, %v322
        %v401 = vpop.permute.xlu0 %400
        %404 = vset.pattern.permute.xlu0 0
        %405 = vperm.xlu0 %404, %v323
        %v406 = vpop.permute.xlu0 %405
        %409 = vset.pattern.permute.xlu0 0
        %410 = vperm.xlu0 %409, %v324
        %v411 = vpop.permute.xlu0 %410
        %414 = vset.pattern.permute.xlu0 0
        %415 = vperm.xlu0 %414, %v325
        %v416 = vpop.permute.xlu0 %415
        %419 = vset.pattern.permute.xlu0 0
        %420 = vperm.xlu0 %419, %v326
        %v421 = vpop.permute.xlu0 %420
        %424 = vset.pattern.permute.xlu0 0
        %425 = vperm.xlu0 %424, %v327
        %v426 = vpop.permute.xlu0 %425
        %429 = vset.pattern.permute.xlu0 0
        %430 = vperm.xlu0 %429, %v328
        %v431 = vpop.permute.xlu0 %430
        %434 = vset.pattern.permute.xlu0 0
        %435 = vperm.xlu0 %434, %v329
        %v436 = vpop.permute.xlu0 %435
        %439 = vset.pattern.permute.xlu0 0
        %440 = vperm.xlu0 %439, %v330
        %v441 = vpop.permute.xlu0 %440
        %444 = vset.pattern.permute.xlu0 0
        %445 = vperm.xlu0 %444, %v331
        %v446 = vpop.permute.xlu0 %445
        %449 = vset.pattern.permute.xlu0 0
        %450 = vperm.xlu0 %449, %v332
        %v451 = vpop.permute.xlu0 %450
        %454 = vset.pattern.permute.xlu0 0
        %455 = vperm.xlu0 %454, %v333
        %v456 = vpop.permute.xlu0 %455
        %459 = vset.pattern.permute.xlu0 0
        %460 = vperm.xlu0 %459, %v334
        %v461 = vpop.permute.xlu0 %460
        %464 = vset.pattern.permute.xlu0 0
        %465 = vperm.xlu0 %464, %v335
        %v466 = vpop.permute.xlu0 %465
        %469 = vset.pattern.permute.xlu0 0
        %470 = vperm.xlu0 %469, %v336
        %v471 = vpop.permute.xlu0 %470
        %474 = vset.pattern.permute.xlu0 0
        %475 = vperm.xlu0 %474, %v337
        %v476 = vpop.permute.xlu0 %475
        %479 = vset.pattern.permute.xlu0 0
        %480 = vperm.xlu0 %479, %v338
        %v481 = vpop.permute.xlu0 %480
        %484 = vset.pattern.permute.xlu0 0
        %485 = vperm.xlu0 %484, %v339
        %v486 = vpop.permute.xlu0 %485
        %489 = vset.pattern.permute.xlu0 0
        %490 = vperm.xlu0 %489, %v340
        %v491 = vpop.permute.xlu0 %490
        %494 = vset.pattern.permute.xlu0 0
        %495 = vperm.xlu0 %494, %v341
        %v496 = vpop.permute.xlu0 %495
        %499 = vset.pattern.permute.xlu0 0
        %500 = vperm.xlu0 %499, %v342
        %v501 = vpop.permute.xlu0 %500
        %v503 = vmul.f32 %v279, %v346
        %v504 = vmul.f32 %v280, %v351
        %v505 = vmul.f32 %v281, %v356
        %v506 = vmul.f32 %v282, %v361
        %v507 = vmul.f32 %v283, %v366
        %v508 = vmul.f32 %v284, %v371
        %v509 = vmul.f32 %v285, %v376
        %v510 = vmul.f32 %v286, %v381
        %v511 = vmul.f32 %v287, %v386
        %v512 = vmul.f32 %v288, %v391
        %v513 = vmul.f32 %v289, %v396
        %v514 = vmul.f32 %v290, %v401
        %v515 = vmul.f32 %v291, %v406
        %v516 = vmul.f32 %v292, %v411
        %v517 = vmul.f32 %v293, %v416
        %v518 = vmul.f32 %v294, %v421
        %v519 = vmul.f32 %v295, %v426
        %v520 = vmul.f32 %v296, %v431
        %v521 = vmul.f32 %v297, %v436
        %v522 = vmul.f32 %v298, %v441
        %v523 = vmul.f32 %v299, %v446
        %v524 = vmul.f32 %v300, %v451
        %v525 = vmul.f32 %v301, %v456
        %v526 = vmul.f32 %v302, %v461
        %v527 = vmul.f32 %v303, %v466
        %v528 = vmul.f32 %v304, %v471
        %v529 = vmul.f32 %v305, %v476
        %v530 = vmul.f32 %v306, %v481
        %v531 = vmul.f32 %v307, %v486
        %v532 = vmul.f32 %v308, %v491
        %v533 = vmul.f32 %v309, %v496
        %v534 = vmul.f32 %v310, %v501
        %v535 = vpack.c.bf16 %v504, %v503
        %v536 = vpack.c.bf16 %v506, %v505
        %v537 = vpack.c.bf16 %v508, %v507
        %v538 = vpack.c.bf16 %v510, %v509
        %v539 = vpack.c.bf16 %v512, %v511
        %v540 = vpack.c.bf16 %v514, %v513
        %v541 = vpack.c.bf16 %v516, %v515
        %v542 = vpack.c.bf16 %v518, %v517
        %v543 = vpack.c.bf16 %v520, %v519
        %v544 = vpack.c.bf16 %v522, %v521
        %v545 = vpack.c.bf16 %v524, %v523
        %v546 = vpack.c.bf16 %v526, %v525
        %v547 = vpack.c.bf16 %v528, %v527
        %v548 = vpack.c.bf16 %v530, %v529
        %v549 = vpack.c.bf16 %v532, %v531
        %v550 = vpack.c.bf16 %v534, %v533
        %v551 = vld [vmem:[%s269] sm:$0xff]
        %v552 = vld [vmem:[%s269 + $0x8] sm:$0xff]
        %v553 = vld [vmem:[%s269 + $0x10] sm:$0xff]
        %v554 = vld [vmem:[%s269 + $0x18] sm:$0xff]
        %v555 = vld [vmem:[%s269 + $0x20] sm:$0xff]
        %v556 = vld [vmem:[%s269 + $0x28] sm:$0xff]
        %v557 = vld [vmem:[%s269 + $0x30] sm:$0xff]
        %v558 = vld [vmem:[%s269 + $0x38] sm:$0xff]
        %v559 = vunpack.c.l.s8.bf16 %v551
        %v560 = vunpack.c.l.s8.bf16 %v552
        %v561 = vunpack.c.h.s8.bf16 %v551
        %v562 = vunpack.c.h.s8.bf16 %v552
        %v563 = vunpack.c.l.s8.bf16 %v553
        %v564 = vunpack.c.l.s8.bf16 %v554
        %v565 = vunpack.c.h.s8.bf16 %v553
        %v566 = vunpack.c.h.s8.bf16 %v554
        %v567 = vunpack.c.l.s8.bf16 %v555
        %v568 = vunpack.c.l.s8.bf16 %v556
        %v569 = vunpack.c.h.s8.bf16 %v555
        %v570 = vunpack.c.h.s8.bf16 %v556
        %v571 = vunpack.c.l.s8.bf16 %v557
        %v572 = vunpack.c.l.s8.bf16 %v558
        %v573 = vunpack.c.h.s8.bf16 %v557
        %v574 = vunpack.c.h.s8.bf16 %v558
        %575 = vmatprep.subr.bf16.mxu0 0
        %576 = vmatpush1.bf16.msra.mxu0 %v542
        %577 = vmatprep.subr.bf16.mxu0 0
        %578 = vmatpush1.bf16.msra.mxu0 %v541
        %579 = vmatprep.subr.bf16.mxu0 0
        %580 = vmatpush1.bf16.msra.mxu0 %v540
        %581 = vmatprep.subr.bf16.mxu0 0
        %582 = vmatpush1.bf16.msra.mxu0 %v539
        %583 = vmatprep.subr.bf16.mxu0 0
        %584 = vmatpush1.bf16.msra.mxu0 %v538
        %585 = vmatprep.subr.bf16.mxu0 0
        %586 = vmatpush1.bf16.msra.mxu0 %v537
        %587 = vmatprep.subr.bf16.mxu0 0
        %588 = vmatpush1.bf16.msra.mxu0 %v536
        %589 = vmatprep.subr.bf16.mxu0 0
        %590 = vmatpush1.bf16.msra.mxu0 %v535
        %591 = vmatprep.subr.bf16.mxu0 0
        %592 = vmatpush2.bf16.msra.mxu0 %v550
        %593 = vmatprep.subr.bf16.mxu0 0
        %594 = vmatpush2.bf16.msra.mxu0 %v549
        %595 = vmatprep.subr.bf16.mxu0 0
        %596 = vmatpush2.bf16.msra.mxu0 %v548
        %597 = vmatprep.subr.bf16.mxu0 0
        %598 = vmatpush2.bf16.msra.mxu0 %v547
        %599 = vmatprep.subr.bf16.mxu0 0
        %600 = vmatpush2.bf16.msra.mxu0 %v546
        %601 = vmatprep.subr.bf16.mxu0 0
        %602 = vmatpush2.bf16.msra.mxu0 %v545
        %603 = vmatprep.subr.bf16.mxu0 0
        %604 = vmatpush2.bf16.msra.mxu0 %v544
        %605 = vmatprep.subr.bf16.mxu0 0
        %606 = vmatpush2.bf16.msra.mxu0 %v543
        %607 = vmatprep.mubr.bf16.mxu0 %v560
        %608 = vmatmul.mubr.bf16.gmra.mxu0 %v559
        %v609 = vpop.f32.mrf.mxu0
        %v610 = vadd.f32 0.0, %v609
        %v611 = vpop.f32.mrf.mxu0
        %v612 = vpop.f32.mrf.mxu0
        %v613 = vadd.f32 0.0, %v612
        %v614 = vpop.f32.mrf.mxu0
        %615 = vmatprep.mubr.bf16.mxu0 %v562
        %616 = vmatmul.mubr.bf16.gmra.mxu0 %v561
        %v617 = vpop.f32.mrf.mxu0
        %v618 = vadd.f32 0.0, %v617
        %v619 = vpop.f32.mrf.mxu0
        %v620 = vpop.f32.mrf.mxu0
        %v621 = vadd.f32 0.0, %v620
        %v622 = vpop.f32.mrf.mxu0
        %623 = vmatprep.mubr.bf16.mxu0 %v564
        %624 = vmatmul.mubr.bf16.gmra.mxu0 %v563
        %v625 = vpop.f32.mrf.mxu0
        %v626 = vadd.f32 0.0, %v625
        %v627 = vpop.f32.mrf.mxu0
        %v628 = vpop.f32.mrf.mxu0
        %v629 = vadd.f32 0.0, %v628
        %v630 = vpop.f32.mrf.mxu0
        %631 = vmatprep.mubr.bf16.mxu0 %v566
        %632 = vmatmul.mubr.bf16.gmra.mxu0 %v565
        %v633 = vpop.f32.mrf.mxu0
        %v634 = vadd.f32 0.0, %v633
        %v635 = vpop.f32.mrf.mxu0
        %v636 = vpop.f32.mrf.mxu0
        %v637 = vadd.f32 0.0, %v636
        %v638 = vpop.f32.mrf.mxu0
        %639 = vmatprep.mubr.bf16.mxu0 %v568
        %640 = vmatmul.mubr.bf16.gmra.mxu0 %v567
        %v641 = vpop.f32.mrf.mxu0
        %v642 = vadd.f32 0.0, %v641
        %v643 = vpop.f32.mrf.mxu0
        %v644 = vpop.f32.mrf.mxu0
        %v645 = vadd.f32 0.0, %v644
        %v646 = vpop.f32.mrf.mxu0
        %647 = vmatprep.mubr.bf16.mxu0 %v570
        %648 = vmatmul.mubr.bf16.gmra.mxu0 %v569
        %v649 = vpop.f32.mrf.mxu0
        %v650 = vadd.f32 0.0, %v649
        %v651 = vpop.f32.mrf.mxu0
        %v652 = vpop.f32.mrf.mxu0
        %v653 = vadd.f32 0.0, %v652
        %v654 = vpop.f32.mrf.mxu0
        %655 = vmatprep.mubr.bf16.mxu0 %v572
        %656 = vmatmul.mubr.bf16.gmra.mxu0 %v571
        %v657 = vpop.f32.mrf.mxu0
        %v658 = vadd.f32 0.0, %v657
        %v659 = vpop.f32.mrf.mxu0
        %v660 = vpop.f32.mrf.mxu0
        %v661 = vadd.f32 0.0, %v660
        %v662 = vpop.f32.mrf.mxu0
        %663 = vmatprep.mubr.bf16.mxu0 %v574
        %664 = vmatmul.mubr.bf16.gmra.mxu0 %v573
        %v665 = vpop.f32.mrf.mxu0
        %v666 = vadd.f32 0.0, %v665
        %v667 = vpop.f32.mrf.mxu0
        %v668 = vpop.f32.mrf.mxu0
        %v669 = vadd.f32 0.0, %v668
        %v670 = vpop.f32.mrf.mxu0
        %671 = vdwg.mxu0
        %v672 = vld [vmem:[%s275] sm:$0xff]
        %v673 = vld [vmem:[%s275 + $0x8] sm:$0xff]
        %v674 = vld [vmem:[%s275 + $0x10] sm:$0xff]
        %v675 = vld [vmem:[%s275 + $0x18] sm:$0xff]
        %v676 = vld [vmem:[%s275 + $0x20] sm:$0xff]
        %v677 = vld [vmem:[%s275 + $0x28] sm:$0xff]
        %v678 = vld [vmem:[%s275 + $0x30] sm:$0xff]
        %v679 = vld [vmem:[%s275 + $0x38] sm:$0xff]
        %v680 = vld [vmem:[%s275 + $0x40] sm:$0xff]
        %v681 = vld [vmem:[%s275 + $0x48] sm:$0xff]
        %v682 = vld [vmem:[%s275 + $0x50] sm:$0xff]
        %v683 = vld [vmem:[%s275 + $0x58] sm:$0xff]
        %v684 = vld [vmem:[%s275 + $0x60] sm:$0xff]
        %v685 = vld [vmem:[%s275 + $0x68] sm:$0xff]
        %v686 = vld [vmem:[%s275 + $0x70] sm:$0xff]
        %v687 = vld [vmem:[%s275 + $0x78] sm:$0xff]
        %689 = vset.pattern.permute.xlu0 0
        %690 = vperm.xlu0 %689, %v672
        %v691 = vpop.permute.xlu0 %690
        %694 = vset.pattern.permute.xlu0 0
        %695 = vperm.xlu0 %694, %v673
        %v696 = vpop.permute.xlu0 %695
        %699 = vset.pattern.permute.xlu0 0
        %700 = vperm.xlu0 %699, %v674
        %v701 = vpop.permute.xlu0 %700
        %704 = vset.pattern.permute.xlu0 0
        %705 = vperm.xlu0 %704, %v675
        %v706 = vpop.permute.xlu0 %705
        %709 = vset.pattern.permute.xlu0 0
        %710 = vperm.xlu0 %709, %v676
        %v711 = vpop.permute.xlu0 %710
        %714 = vset.pattern.permute.xlu0 0
        %715 = vperm.xlu0 %714, %v677
        %v716 = vpop.permute.xlu0 %715
        %719 = vset.pattern.permute.xlu0 0
        %720 = vperm.xlu0 %719, %v678
        %v721 = vpop.permute.xlu0 %720
        %724 = vset.pattern.permute.xlu0 0
        %725 = vperm.xlu0 %724, %v679
        %v726 = vpop.permute.xlu0 %725
        %729 = vset.pattern.permute.xlu0 0
        %730 = vperm.xlu0 %729, %v680
        %v731 = vpop.permute.xlu0 %730
        %734 = vset.pattern.permute.xlu0 0
        %735 = vperm.xlu0 %734, %v681
        %v736 = vpop.permute.xlu0 %735
        %739 = vset.pattern.permute.xlu0 0
        %740 = vperm.xlu0 %739, %v682
        %v741 = vpop.permute.xlu0 %740
        %744 = vset.pattern.permute.xlu0 0
        %745 = vperm.xlu0 %744, %v683
        %v746 = vpop.permute.xlu0 %745
        %749 = vset.pattern.permute.xlu0 0
        %750 = vperm.xlu0 %749, %v684
        %v751 = vpop.permute.xlu0 %750
        %754 = vset.pattern.permute.xlu0 0
        %755 = vperm.xlu0 %754, %v685
        %v756 = vpop.permute.xlu0 %755
        %759 = vset.pattern.permute.xlu0 0
        %760 = vperm.xlu0 %759, %v686
        %v761 = vpop.permute.xlu0 %760
        %764 = vset.pattern.permute.xlu0 0
        %765 = vperm.xlu0 %764, %v687
        %v766 = vpop.permute.xlu0 %765
        %v768 = vmul.f32 %v610, %v691
        %v769 = vmul.f32 %v613, %v696
        %v770 = vmul.f32 %v618, %v701
        %v771 = vmul.f32 %v621, %v706
        %v772 = vmul.f32 %v626, %v711
        %v773 = vmul.f32 %v629, %v716
        %v774 = vmul.f32 %v634, %v721
        %v775 = vmul.f32 %v637, %v726
        %v776 = vmul.f32 %v642, %v731
        %v777 = vmul.f32 %v645, %v736
        %v778 = vmul.f32 %v650, %v741
        %v779 = vmul.f32 %v653, %v746
        %v780 = vmul.f32 %v658, %v751
        %v781 = vmul.f32 %v661, %v756
        %v782 = vmul.f32 %v666, %v761
        %v783 = vmul.f32 %v669, %v766
        %v784 = vld [vmem:[%s4] sm:$0xff]
        %v785 = vld [vmem:[%s5] sm:$0x1]
        %v787 = vlaneseq
        %v788 = vshrl.u32 %v787, 7
        %v789 = vsub.s32 0, %v788
        %v790 = vrot.slane %v785, %v789
        %vm792 = vcmask 64512
        %v794 = vsel %vm792, %v768, 0
        %v797 = vsel %vm792, %v769, 0
        %v800 = vsel %vm792, %v770, 0
        %v803 = vsel %vm792, %v771, 0
        %v806 = vsel %vm792, %v772, 0
        %v809 = vsel %vm792, %v773, 0
        %v812 = vsel %vm792, %v774, 0
        %v815 = vsel %vm792, %v775, 0
        %v818 = vsel %vm792, %v776, 0
        %v821 = vsel %vm792, %v777, 0
        %v824 = vsel %vm792, %v778, 0
        %v827 = vsel %vm792, %v779, 0
        %v830 = vsel %vm792, %v780, 0
        %v833 = vsel %vm792, %v781, 0
        %v836 = vsel %vm792, %v782, 0
        %v839 = vsel %vm792, %v783, 0
        %841 = vmatprep.subr.mxu0 0.0
        %842 = vmatpush1.msra.mxu0 0.0
        %843 = vmatprep.subr.mxu0 0.0
        %844 = vmatpush1.msra.mxu0 0.0
        %845 = vmatprep.subr.mxu0 0.0
        %846 = vmatpush1.msra.mxu0 0.0
        %847 = vmatprep.subr.mxu0 0.0
        %848 = vmatpush1.msra.mxu0 0.0
        %849 = vmatprep.subr.mxu0 0.0
        %850 = vmatpush1.msra.mxu0 0.0
        %851 = vmatprep.subr.mxu0 0.0
        %852 = vmatpush1.msra.mxu0 0.0
        %853 = vmatprep.subr.mxu0 0.0
        %854 = vmatpush1.msra.mxu0 0.0
        %855 = vmatprep.subr.mxu0 0.0
        %856 = vmatpush1.msra.mxu0 0.0
        %857 = vmatprep.subr.mxu0 0.0
        %858 = vmatpush1.msra.mxu0 0.0
        %859 = vmatprep.subr.mxu0 0.0
        %860 = vmatpush1.msra.mxu0 0.0
        %861 = vmatprep.subr.mxu0 0.0
        %862 = vmatpush1.msra.mxu0 0.0
        %863 = vmatprep.subr.mxu0 0.0
        %864 = vmatpush1.msra.mxu0 0.0
        %865 = vmatprep.subr.mxu0 0.0
        %866 = vmatpush1.msra.mxu0 0.0
        %867 = vmatprep.subr.mxu0 0.0
        %868 = vmatpush1.msra.mxu0 0.0
        %869 = vmatprep.subr.mxu0 0.0
        %870 = vmatpush1.msra.mxu0 0.0
        %871 = vmatprep.subr.mxu0 0.0
        %872 = vmatpush1.msra.mxu0 %v784
        %873 = vmatprep.subr.mxu0 0.0
        %874 = vmatpush2.msra.mxu0 0.0
        %875 = vmatprep.subr.mxu0 0.0
        %876 = vmatpush2.msra.mxu0 0.0
        %877 = vmatprep.subr.mxu0 0.0
        %878 = vmatpush2.msra.mxu0 0.0
        %879 = vmatprep.subr.mxu0 0.0
        %880 = vmatpush2.msra.mxu0 0.0
        %881 = vmatprep.subr.mxu0 0.0
        %882 = vmatpush2.msra.mxu0 0.0
        %883 = vmatprep.subr.mxu0 0.0
        %884 = vmatpush2.msra.mxu0 0.0
        %885 = vmatprep.subr.mxu0 0.0
        %886 = vmatpush2.msra.mxu0 0.0
        %887 = vmatprep.subr.mxu0 0.0
        %888 = vmatpush2.msra.mxu0 0.0
        %889 = vmatprep.subr.mxu0 0.0
        %890 = vmatpush2.msra.mxu0 0.0
        %891 = vmatprep.subr.mxu0 0.0
        %892 = vmatpush2.msra.mxu0 0.0
        %893 = vmatprep.subr.mxu0 0.0
        %894 = vmatpush2.msra.mxu0 0.0
        %895 = vmatprep.subr.mxu0 0.0
        %896 = vmatpush2.msra.mxu0 0.0
        %897 = vmatprep.subr.mxu0 0.0
        %898 = vmatpush2.msra.mxu0 0.0
        %899 = vmatprep.subr.mxu0 0.0
        %900 = vmatpush2.msra.mxu0 0.0
        %901 = vmatprep.subr.mxu0 0.0
        %902 = vmatpush2.msra.mxu0 0.0
        %903 = vmatprep.subr.mxu0 0.0
        %904 = vmatpush2.msra.mxu0 0.0
        %905 = vmatprep.mubr.f32.mxu0 0.0
        %906 = vmatmul.mubr.f32.gmra.mxu0 %v794
        %v907 = vpop.f32.mrf.mxu0
        %v908 = vadd.f32 %v790, %v907
        %v909 = vpop.f32.mrf.mxu0
        %910 = vmatprep.mubr.f32.mxu0 0.0
        %911 = vmatmul.mubr.f32.gmra.mxu0 %v797
        %v912 = vpop.f32.mrf.mxu0
        %v913 = vadd.f32 %v790, %v912
        %v914 = vpop.f32.mrf.mxu0
        %915 = vmatprep.mubr.f32.mxu0 0.0
        %916 = vmatmul.mubr.f32.gmra.mxu0 %v800
        %v917 = vpop.f32.mrf.mxu0
        %v918 = vadd.f32 %v790, %v917
        %v919 = vpop.f32.mrf.mxu0
        %920 = vmatprep.mubr.f32.mxu0 0.0
        %921 = vmatmul.mubr.f32.gmra.mxu0 %v803
        %v922 = vpop.f32.mrf.mxu0
        %v923 = vadd.f32 %v790, %v922
        %v924 = vpop.f32.mrf.mxu0
        %925 = vmatprep.mubr.f32.mxu0 0.0
        %926 = vmatmul.mubr.f32.gmra.mxu0 %v806
        %v927 = vpop.f32.mrf.mxu0
        %v928 = vadd.f32 %v790, %v927
        %v929 = vpop.f32.mrf.mxu0
        %930 = vmatprep.mubr.f32.mxu0 0.0
        %931 = vmatmul.mubr.f32.gmra.mxu0 %v809
        %v932 = vpop.f32.mrf.mxu0
        %v933 = vadd.f32 %v790, %v932
        %v934 = vpop.f32.mrf.mxu0
        %935 = vmatprep.mubr.f32.mxu0 0.0
        %936 = vmatmul.mubr.f32.gmra.mxu0 %v812
        %v937 = vpop.f32.mrf.mxu0
        %v938 = vadd.f32 %v790, %v937
        %v939 = vpop.f32.mrf.mxu0
        %940 = vmatprep.mubr.f32.mxu0 0.0
        %941 = vmatmul.mubr.f32.gmra.mxu0 %v815
        %v942 = vpop.f32.mrf.mxu0
        %v943 = vadd.f32 %v790, %v942
        %v944 = vpop.f32.mrf.mxu0
        %945 = vmatprep.mubr.f32.mxu0 0.0
        %946 = vmatmul.mubr.f32.gmra.mxu0 %v818
        %v947 = vpop.f32.mrf.mxu0
        %v948 = vadd.f32 %v790, %v947
        %v949 = vpop.f32.mrf.mxu0
        %950 = vmatprep.mubr.f32.mxu0 0.0
        %951 = vmatmul.mubr.f32.gmra.mxu0 %v821
        %v952 = vpop.f32.mrf.mxu0
        %v953 = vadd.f32 %v790, %v952
        %v954 = vpop.f32.mrf.mxu0
        %955 = vmatprep.mubr.f32.mxu0 0.0
        %956 = vmatmul.mubr.f32.gmra.mxu0 %v824
        %v957 = vpop.f32.mrf.mxu0
        %v958 = vadd.f32 %v790, %v957
        %v959 = vpop.f32.mrf.mxu0
        %960 = vmatprep.mubr.f32.mxu0 0.0
        %961 = vmatmul.mubr.f32.gmra.mxu0 %v827
        %v962 = vpop.f32.mrf.mxu0
        %v963 = vadd.f32 %v790, %v962
        %v964 = vpop.f32.mrf.mxu0
        %965 = vmatprep.mubr.f32.mxu0 0.0
        %966 = vmatmul.mubr.f32.gmra.mxu0 %v830
        %v967 = vpop.f32.mrf.mxu0
        %v968 = vadd.f32 %v790, %v967
        %v969 = vpop.f32.mrf.mxu0
        %970 = vmatprep.mubr.f32.mxu0 0.0
        %971 = vmatmul.mubr.f32.gmra.mxu0 %v833
        %v972 = vpop.f32.mrf.mxu0
        %v973 = vadd.f32 %v790, %v972
        %v974 = vpop.f32.mrf.mxu0
        %975 = vmatprep.mubr.f32.mxu0 0.0
        %976 = vmatmul.mubr.f32.gmra.mxu0 %v836
        %v977 = vpop.f32.mrf.mxu0
        %v978 = vadd.f32 %v790, %v977
        %v979 = vpop.f32.mrf.mxu0
        %980 = vmatprep.mubr.f32.mxu0 0.0
        %981 = vmatmul.mubr.f32.gmra.mxu0 %v839
        %v982 = vpop.f32.mrf.mxu0
        %v983 = vadd.f32 %v790, %v982
        %v984 = vpop.f32.mrf.mxu0
        %985 = vdwg.mxu0
        %v986 = vmax.f32 %v908, 0.0
        %v987 = vmax.f32 %v913, 0.0
        %v988 = vmax.f32 %v918, 0.0
        %v989 = vmax.f32 %v923, 0.0
        %v990 = vmax.f32 %v928, 0.0
        %v991 = vmax.f32 %v933, 0.0
        %v992 = vmax.f32 %v938, 0.0
        %v993 = vmax.f32 %v943, 0.0
        %v994 = vmax.f32 %v948, 0.0
        %v995 = vmax.f32 %v953, 0.0
        %v996 = vmax.f32 %v958, 0.0
        %v997 = vmax.f32 %v963, 0.0
        %v998 = vmax.f32 %v968, 0.0
        %v999 = vmax.f32 %v973, 0.0
        %v1000 = vmax.f32 %v978, 0.0
        %v1001 = vmax.f32 %v983, 0.0
        %1002 = vst [vmem:[%s263] sm:$0xff] %v986
        %1003 = vst [vmem:[%s263 + $0x8] sm:$0xff] %v987
        %1004 = vst [vmem:[%s263 + $0x10] sm:$0xff] %v988
        %1005 = vst [vmem:[%s263 + $0x18] sm:$0xff] %v989
        %1006 = vst [vmem:[%s263 + $0x20] sm:$0xff] %v990
        %1007 = vst [vmem:[%s263 + $0x28] sm:$0xff] %v991
        %1008 = vst [vmem:[%s263 + $0x30] sm:$0xff] %v992
        %1009 = vst [vmem:[%s263 + $0x38] sm:$0xff] %v993
        %1010 = vst [vmem:[%s263 + $0x40] sm:$0xff] %v994
        %1011 = vst [vmem:[%s263 + $0x48] sm:$0xff] %v995
        %1012 = vst [vmem:[%s263 + $0x50] sm:$0xff] %v996
        %1013 = vst [vmem:[%s263 + $0x58] sm:$0xff] %v997
        %1014 = vst [vmem:[%s263 + $0x60] sm:$0xff] %v998
        %1015 = vst [vmem:[%s263 + $0x68] sm:$0xff] %v999
        %1016 = vst [vmem:[%s263 + $0x70] sm:$0xff] %v1000
        %1017 = vst [vmem:[%s263 + $0x78] sm:$0xff] %v1001
        %s1018 = sand.u32 %s164, 1
        %s1019 = scalar_lea.sflag [#allocation3], %s1018
        %s1020 = sand.u32 %s164, 1
        %s1021 = smul.addr %s1020, 128
        %s1022 = scalar_lea.vmem [#allocation2], %s1021
        // Predicated region
        $region45: #{tpu_custom_call.1} parent=43 // pred_check
          %p1023 = pneg %p174
        $region46: #{tpu_custom_call.1} parent=43 // pred_check_branch
          %1025 = sbr.rel (%p1023) target = $region48
        $region47: #{tpu_custom_call.1} parent=43 // pred_region
          %s1026 = smul.u32 16, %s20
          %s1028 = ssub.s32 2048, 2048
          %1029 = vsyncadd %s1019, %s1028
          %s1030 = smul.addr %s1026, 128
          %s1031 = scalar_lea.hbm %s6, %s1030
          %s1032 = sshll.u32 %s1022, 4
          %s1033 = int_to_ptr.vmem [resolvable:$true] %s1032
          %1038 = dma.vmem_to_hbm [thread:$0]  %s1033, 2048, %s1031, %s1019, 128, 128, 8
        $region48: #{tpu_custom_call.1} parent=43 // pred_fallthru
          _
      $region44: #{tpu_custom_call.1} parent=5 // pred_fallthru
        _
      %p1039 = scmp.le.s32.totalorder 2, %s15
      // Predicated region
      $region49: #{tpu_custom_call.1} parent=5 // pred_check
        %p1040 = pneg %p1039
      $region50: #{tpu_custom_call.1} parent=5 // pred_check_branch
        %1042 = sbr.rel (%p1040) target = $region52
      $region51: #{tpu_custom_call.1} parent=5 // pred_region
        %s1043 = ssub.s32 %s15, 2
        // Predicated region
        $region53: #{tpu_custom_call.1} parent=51 // pred_check
          %p1044 = pneg %p180
        $region54: #{tpu_custom_call.1} parent=51 // pred_check_branch
          %1046 = sbr.rel (%p1044) target = $region56
        $region55: #{tpu_custom_call.1} parent=51 // pred_region
          %s1047 = sand.u32 %s165, 1
          %s1048 = scalar_lea.sflag [#allocation3], %s1047
          %s1049 = sand.u32 %s165, 1
          %s1050 = smul.addr %s1049, 128
          %s1051 = scalar_lea.vmem [#allocation2], %s1050
          %1052 = dma.done %s1048, 2048
        $region56: #{tpu_custom_call.1} parent=51 // pred_fallthru
          _
      $region52: #{tpu_custom_call.1} parent=5 // pred_fallthru
        _
    $region6: #{tpu_custom_call.1} parent=1 // loop_footer
      %s19 = sadd.s32 1, %s15
    $region7: #{tpu_custom_call.1} parent=1 // loop_footer_branch
      %14 = sbr.rel target = $region3
    $region8: #{tpu_custom_call.1} parent=1 // loop_exit
      _
    %1053 = vsyncpa [#allocation3], 1
    %s1054 = scalar_lea.sflag [#allocation3], 1
    %1055 = vsyncpa %s1054, 1

</llo_original>
